<compile_context>
chip_gen: v7x
topology: tpu7x:2x2x1
jax: 0.10.0
libtpu: 0.0.40
codegen_flags: <defaults>
</compile_context>

<pallas_src>
import jax
import jax.numpy as jnp
from jax.experimental import pallas as pl
from jax.experimental.pallas import tpu as pltpu


def _gaussian_layer_kernel(x_ref, w_ref, c_ref, out_ref):
    g = out_ref.shape[-1] // 2
    # One MXU pass produces both heads for all g packed batch rows at once.
    raw = jnp.dot(x_ref[...], w_ref[...],
                  preferred_element_type=jnp.float32) - c_ref[...]
    # Columns [0:g) -> mean (linear); columns [g:2g) -> variance head.
    out_ref[:, :g] = raw[:, :g].astype(out_ref.dtype)
    v = raw[:, g:]
    sp = jnp.maximum(v, 0.0) + jnp.log1p(jnp.exp(-jnp.abs(v))) + 1e-6
    out_ref[:, g:] = sp.astype(out_ref.dtype)


def _round_up(n, m):
    return pl.cdiv(n, m) * m


def _vmem_budget_bytes():
    """(per-buffer x-tile byte target, vmem_limit_bytes or None) per chip gen."""
    try:
        kind = jax.devices()[0].device_kind.lower()
    except Exception:
        kind = ""
    if "v6" in kind:
        return 8 << 20, None           # v6e: 32 MiB scoped default fits 2x8 MiB
    if "7" in kind:
        return 12 << 20, 48 << 20      # v7x: 64 MiB physical; raise scoped limit
    return 4 << 20, None               # v5e & unknown: 16 MiB scoped default


def _choose_packed_tile(np_rows, lane, target_bytes, block_rows, g):
    """Packed-row tile: largest multiple of 8 under the per-buffer byte target,
    capped so the grid keeps >= 2 blocks (v7x has two TensorCores)."""
    if np_rows <= 8:
        return np_rows                  # single full-extent block
    if block_rows is not None:
        tbp = block_rows // g
    else:
        tbp = target_bytes // (lane * 4)
    tbp = max(8, (tbp // 8) * 8)
    half = max(8, _round_up(pl.cdiv(np_rows, 2), 8))
    return min(tbp, half)


def gaussian_layer(x, w1, b1, w2, b2, *, block_rows=None):
    """x: (B, F) float32; w1/b1/w2/b2: (F,) float32.

    Returns (mean (B,), var (B,)) matching the PyTorch module's forward.
    """
    B, F = x.shape
    x = x.astype(jnp.float32)
    w1 = w1.astype(jnp.float32)
    b1 = b1.astype(jnp.float32)
    w2 = w2.astype(jnp.float32)
    b2 = b2.astype(jnp.float32)

    # Hoisted bias contraction (exact): (x - b) @ w == x @ w - (b . w).
    c1 = jnp.dot(b1, w1)
    c2 = jnp.dot(b2, w2)

    # Lane-dense packing: g batch rows per 128-lane row.
    if F < 128:
        fp = max(1, pl.next_power_of_2(F))   # divisor of 128, >= F
        g = 128 // fp
    else:
        fp = F
        g = 1
    lane = g * fp

    w1p = w1 if fp == F else jnp.pad(w1, (0, fp - F))
    w2p = w2 if fp == F else jnp.pad(w2, (0, fp - F))
    xp = x if fp == F else jnp.pad(x, ((0, 0), (0, fp - F)))

    # Batch must be a multiple of g for the free (B, fp) -> (B/g, g*fp)
    # reshape; for the common case g | B this pad is a no-op (no HBM copy).
    bg = _round_up(B, g)
    if bg != B:
        xp = jnp.pad(xp, ((0, bg - B), (0, 0)))
    np_rows = bg // g
    xp = xp.reshape(np_rows, lane)           # contiguous reshape -> free

    # Block-diagonal packed weights: column j holds w1 for packed slot j,
    # column g + j holds w2 for packed slot j.
    eye = jnp.eye(g, dtype=jnp.float32)
    wpk = jnp.concatenate(
        [jnp.kron(eye, w1p[:, None]), jnp.kron(eye, w2p[:, None])], axis=1)
    cpk = jnp.concatenate(
        [jnp.full((g,), c1, jnp.float32),
         jnp.full((g,), c2, jnp.float32)]).reshape(1, 2 * g)

    target_bytes, vmem_limit = _vmem_budget_bytes()
    tbp = _choose_packed_tile(np_rows, lane, target_bytes, block_rows, g)
    grid = (pl.cdiv(np_rows, tbp),)          # partial edge block is masked

    compiler_kwargs = {"dimension_semantics": ("parallel",)}
    if vmem_limit is not None:
        compiler_kwargs["vmem_limit_bytes"] = vmem_limit

    out = pl.pallas_call(
        _gaussian_layer_kernel,
        out_shape=jax.ShapeDtypeStruct((np_rows, 2 * g), jnp.float32),
        grid_spec=pltpu.PrefetchScalarGridSpec(
            num_scalar_prefetch=0,
            grid=grid,
            in_specs=[
                pl.BlockSpec((tbp, lane), lambda i: (i, 0)),     # packed x tile
                pl.BlockSpec((lane, 2 * g), lambda i: (0, 0)),   # packed weights
                pl.BlockSpec((1, 2 * g), lambda i: (0, 0)),      # hoisted consts
            ],
            out_specs=pl.BlockSpec((tbp, 2 * g), lambda i: (i, 0)),
        ),
        compiler_params=pltpu.CompilerParams(**compiler_kwargs),
    )(xp, wpk, cpk)

    mean = out[:, :g].reshape(-1)[:B]
    var = out[:, g:].reshape(-1)[:B]
    return mean, var


def reference(x, w1, b1, w2, b2):
    mean = (x - b1) @ w1
    v = (x - b2) @ w2
    var = jnp.log(1.0 + jnp.exp(v)) + 1e-6
    return mean, var


if __name__ == "__main__":
    key = jax.random.PRNGKey(0)
    F = 32
    kx, kw1, kb1, kw2, kb2, kx2 = jax.random.split(key, 6)

    # Deterministic parameter init mirroring the module's __init__ intent:
    # weights ~ xavier-style uniform, biases ~ N(0, 0.5^2).
    bound = (6.0 / (F + 1)) ** 0.5
    w1 = jax.random.uniform(kw1, (F,), minval=-bound, maxval=bound, dtype=jnp.float32)
    w2 = jax.random.uniform(kw2, (F,), minval=-bound, maxval=bound, dtype=jnp.float32)
    b1 = 0.5 * jax.random.normal(kb1, (F,), dtype=jnp.float32)
    b2 = 0.5 * jax.random.normal(kb2, (F,), dtype=jnp.float32)

    # Case 1: module-scale batch (2 packed rows, single block).
    B = 8
    x = jax.random.normal(kx, (B, F), dtype=jnp.float32)
    mean, var = gaussian_layer(x, w1, b1, w2, b2)
    jax.block_until_ready((mean, var))
    ref_mean, ref_var = reference(x, w1, b1, w2, b2)
    assert mean.shape == (B,) and var.shape == (B,)
    assert jnp.allclose(mean, ref_mean, atol=1e-4, rtol=1e-4)
    assert jnp.allclose(var, ref_var, atol=1e-4, rtol=1e-4)

    # Case 2: larger batch, non-multiple of the tile, exercising the masked
    # edge block and the pipelined grid (250 packed rows, 64-row tiles,
    # 4 grid steps) -- no jnp.pad round trip of x.
    B2 = 1000
    x2 = jax.random.normal(kx2, (B2, F), dtype=jnp.float32)
    mean2, var2 = gaussian_layer(x2, w1, b1, w2, b2, block_rows=256)
    jax.block_until_ready((mean2, var2))
    ref_mean2, ref_var2 = reference(x2, w1, b1, w2, b2)
    assert mean2.shape == (B2,) and var2.shape == (B2,)
    assert jnp.allclose(mean2, ref_mean2, atol=1e-4, rtol=1e-4)
    assert jnp.allclose(var2, ref_var2, atol=1e-4, rtol=1e-4)

    print("KERNEL_OK")
</pallas_src>

<mosaic_0001>
module attributes {stable_mosaic.version = 11 : i64} {
  func.func @_gaussian_layer_kernel(%arg0: i32, %arg1: memref<2x128xf32, #tpu.memory_space<vmem>>, %arg2: memref<128x8xf32, #tpu.memory_space<vmem>>, %arg3: memref<1x8xf32, #tpu.memory_space<vmem>>, %arg4: memref<2x8xf32, #tpu.memory_space<vmem>>) attributes {dimension_semantics = [#tpu.dimension_semantics<parallel>], iteration_bounds = array<i64: 1>, scalar_prefetch = 0 : i64, scratch_operands = 0 : i64, tpu.core_type = #tpu.core_type<tc>, window_params = [{transform_indices = @transform_0, window_bounds = array<i64: 2, 128>}, {pipeline_mode = #tpu.pipeline_mode<synchronous>, transform_indices = @transform_1, window_bounds = array<i64: 128, 8>}, {pipeline_mode = #tpu.pipeline_mode<synchronous>, transform_indices = @transform_2, window_bounds = array<i64: 1, 8>}, {transform_indices = @transform_3, window_bounds = array<i64: 2, 8>}]} {
    %c0 = arith.constant 0 : index
    %c0_0 = arith.constant 0 : index
    %0 = vector.load %arg1[%c0, %c0_0] : memref<2x128xf32, #tpu.memory_space<vmem>>, vector<2x128xf32>
    %c0_1 = arith.constant 0 : index
    %c0_2 = arith.constant 0 : index
    %1 = vector.load %arg2[%c0_1, %c0_2] : memref<128x8xf32, #tpu.memory_space<vmem>>, vector<128x8xf32>
    %cst = arith.constant dense<0.000000e+00> : vector<2x8xf32>
    %2 = tpu.matmul %0, %1, %cst {dimension_numbers = #tpu.dot_dimension_numbers<[1], [0], [0], [1], [0, 0, 1, 1], [], []>} : vector<2x128xf32>, vector<128x8xf32>, vector<2x8xf32> -> vector<2x8xf32>
    %c0_3 = arith.constant 0 : index
    %c0_4 = arith.constant 0 : index
    %3 = vector.load %arg3[%c0_3, %c0_4] : memref<1x8xf32, #tpu.memory_space<vmem>>, vector<1x8xf32>
    %4 = vector.broadcast %3 : vector<1x8xf32> to vector<2x8xf32>
    %5 = arith.subf %2, %4 : vector<2x8xf32>
    %6 = vector.extract_strided_slice %5 {offsets = [0, 0], sizes = [2, 4], strides = [1, 1]} : vector<2x8xf32> to vector<2x4xf32>
    %c0_5 = arith.constant 0 : index
    %c0_6 = arith.constant 0 : index
    %7 = vector.load %arg4[%c0_5, %c0_6] : memref<2x8xf32, #tpu.memory_space<vmem>>, vector<2x4xf32>
    tpu.vector_store %arg4[%c0_5, %c0_6], %6 {strides = array<i32>} : memref<2x8xf32, #tpu.memory_space<vmem>>, vector<2x4xf32>,
    %8 = vector.extract_strided_slice %5 {offsets = [0, 4], sizes = [2, 4], strides = [1, 1]} : vector<2x8xf32> to vector<2x4xf32>
    %cst_7 = arith.constant 0.000000e+00 : f32
    %9 = vector.broadcast %cst_7 : f32 to vector<2x4xf32>
    %10 = arith.maximumf %8, %9 : vector<2x4xf32>
    %11 = math.absf %8 : vector<2x4xf32>
    %cst_8 = arith.constant 0.000000e+00 : f32
    %12 = vector.broadcast %cst_8 : f32 to vector<2x4xf32>
    %13 = arith.subf %12, %11 : vector<2x4xf32>
    %14 = math.exp %13 : vector<2x4xf32>
    %15 = math.log1p %14 : vector<2x4xf32>
    %16 = arith.addf %10, %15 : vector<2x4xf32>
    %cst_9 = arith.constant 9.99999997E-7 : f32
    %17 = vector.broadcast %cst_9 : f32 to vector<2x4xf32>
    %18 = arith.addf %16, %17 : vector<2x4xf32>
    %c0_10 = arith.constant 0 : index
    %c4 = arith.constant 4 : index
    %19 = vector.load %arg4[%c0_10, %c4] : memref<2x8xf32, #tpu.memory_space<vmem>>, vector<2x4xf32>
    tpu.vector_store %arg4[%c0_10, %c4], %18 {strides = array<i32>} : memref<2x8xf32, #tpu.memory_space<vmem>>, vector<2x4xf32>,
    return
  }
  func.func @transform_0(%arg0: i32) -> (i32, i32) {
    %c0_i32 = arith.constant 0 : i32
    %c0_i32_0 = arith.constant 0 : i32
    return %arg0, %c0_i32 : i32, i32
  }
  func.func @transform_1(%arg0: i32) -> (i32, i32) {
    %c0_i32 = arith.constant 0 : i32
    %c0_i32_0 = arith.constant 0 : i32
    %c0_i32_1 = arith.constant 0 : i32
    return %c0_i32, %c0_i32_0 : i32, i32
  }
  func.func @transform_2(%arg0: i32) -> (i32, i32) {
    %c0_i32 = arith.constant 0 : i32
    %c0_i32_0 = arith.constant 0 : i32
    %c0_i32_1 = arith.constant 0 : i32
    return %c0_i32, %c0_i32_0 : i32, i32
  }
  func.func @transform_3(%arg0: i32) -> (i32, i32) {
    %c0_i32 = arith.constant 0 : i32
    %c0_i32_0 = arith.constant 0 : i32
    return %arg0, %c0_i32 : i32, i32
  }
}

</mosaic_0001>

<llo_original>
// kernel: tpu_custom_call.1
$region0: #{tpu_custom_call.1}
  #allocation0 [shape = 'u32[]', space=smem, size = 0x4, offset = 0x4, fixed_abs, tag = 'smem constant byte address 0x4 - core index']
  #allocation1 [shape = 'u32[144,128]{1,0:T(1,128)}', space=vmem, size = 0x12000, scoped, tag = 'internal scratch']
  %s0 = inlined_call_operand.vmem [shape: f32[2,128], index: 0, kind: input, shape index: {}]
  %s1 = inlined_call_operand.vmem [shape: f32[128,8], index: 1, kind: input, shape index: {}]
  %s2 = inlined_call_operand.vmem [shape: f32[1,8], index: 2, kind: input, shape index: {}]
  %s3 = inlined_call_operand.hbm [shape: f32[2,8], index: 3, kind: output, shape index: {}]
  %s4 = sld [smem:[#allocation0]]
  $region22: #{tpu_custom_call.1} parent=0
    _
  %s6 = ssub.s32 1, %s4
  %s7 = scalar_select 0, %s6, %s4
  $region1: #{tpu_custom_call.1} parent=0
    #allocation2 [shape = 'u8[1024]{0}', space=vmem, size = 0x400, scoped, tag = 'output window, operand 0, single buffered']
    #allocation3 [shape = 's32[1]{0}', space=sflag, size = 0x4, scoped, tag = 'scoped memory for tpu_custom_call.1']
    %8 = vsyncpa [#allocation3], 0
    // Predicated region
    $region2: #{tpu_custom_call.1} parent=1 // pred_check
      _
    $region3: #{tpu_custom_call.1} parent=1 // pred_check_branch
      %10 = sbr.rel (0) target = $region5
    $region4: #{tpu_custom_call.1} parent=1 // pred_region
      _
    $region5: #{tpu_custom_call.1} parent=1 // pred_fallthru
      _
    // Predicated region
    $region6: #{tpu_custom_call.1} parent=1 // pred_check
      _
    $region7: #{tpu_custom_call.1} parent=1 // pred_check_branch
      %12 = sbr.rel (0) target = $region9
    $region8: #{tpu_custom_call.1} parent=1 // pred_region
      _
    $region9: #{tpu_custom_call.1} parent=1 // pred_fallthru
      _
    // Predicated region
    $region10: #{tpu_custom_call.1} parent=1 // pred_check
      _
    $region11: #{tpu_custom_call.1} parent=1 // pred_check_branch
      %14 = sbr.rel (0) target = $region13
    $region12: #{tpu_custom_call.1} parent=1 // pred_region
      _
    $region13: #{tpu_custom_call.1} parent=1 // pred_fallthru
      _
    %v15 = vld [vmem:[%s0] sm:$0x3]
    %v16 = vld [vmem:[%s1] sm:$0xff]
    %v17 = vld [vmem:[%s1 + $0x8] sm:$0xff]
    %v18 = vld [vmem:[%s1 + $0x10] sm:$0xff]
    %v19 = vld [vmem:[%s1 + $0x18] sm:$0xff]
    %v20 = vld [vmem:[%s1 + $0x20] sm:$0xff]
    %v21 = vld [vmem:[%s1 + $0x28] sm:$0xff]
    %v22 = vld [vmem:[%s1 + $0x30] sm:$0xff]
    %v23 = vld [vmem:[%s1 + $0x38] sm:$0xff]
    %v24 = vld [vmem:[%s1 + $0x40] sm:$0xff]
    %v25 = vld [vmem:[%s1 + $0x48] sm:$0xff]
    %v26 = vld [vmem:[%s1 + $0x50] sm:$0xff]
    %v27 = vld [vmem:[%s1 + $0x58] sm:$0xff]
    %v28 = vld [vmem:[%s1 + $0x60] sm:$0xff]
    %v29 = vld [vmem:[%s1 + $0x68] sm:$0xff]
    %v30 = vld [vmem:[%s1 + $0x70] sm:$0xff]
    %v31 = vld [vmem:[%s1 + $0x78] sm:$0xff]
    %32 = vmatprep.subr.mxu0 0.0
    %33 = vmatpush1.msra.mxu0 %v16
    %34 = vmatprep.subr.mxu0 0.0
    %35 = vmatpush1.msra.mxu0 %v17
    %36 = vmatprep.subr.mxu0 0.0
    %37 = vmatpush1.msra.mxu0 %v18
    %38 = vmatprep.subr.mxu0 0.0
    %39 = vmatpush1.msra.mxu0 %v19
    %40 = vmatprep.subr.mxu0 0.0
    %41 = vmatpush1.msra.mxu0 %v20
    %42 = vmatprep.subr.mxu0 0.0
    %43 = vmatpush1.msra.mxu0 %v21
    %44 = vmatprep.subr.mxu0 0.0
    %45 = vmatpush1.msra.mxu0 %v22
    %46 = vmatprep.subr.mxu0 0.0
    %47 = vmatpush1.msra.mxu0 %v23
    %48 = vmatprep.subr.mxu0 0.0
    %49 = vmatpush1.msra.mxu0 %v24
    %50 = vmatprep.subr.mxu0 0.0
    %51 = vmatpush1.msra.mxu0 %v25
    %52 = vmatprep.subr.mxu0 0.0
    %53 = vmatpush1.msra.mxu0 %v26
    %54 = vmatprep.subr.mxu0 0.0
    %55 = vmatpush1.msra.mxu0 %v27
    %56 = vmatprep.subr.mxu0 0.0
    %57 = vmatpush1.msra.mxu0 %v28
    %58 = vmatprep.subr.mxu0 0.0
    %59 = vmatpush1.msra.mxu0 %v29
    %60 = vmatprep.subr.mxu0 0.0
    %61 = vmatpush1.msra.mxu0 %v30
    %62 = vmatprep.subr.mxu0 0.0
    %63 = vmatpush1.msra.mxu0 %v31
    %64 = vmatprep.subr.mxu0 0.0
    %65 = vmatpush1.msra.mxu0 0.0
    %66 = vmatprep.subr.mxu0 0.0
    %67 = vmatpush1.msra.mxu0 0.0
    %68 = vmatprep.subr.mxu0 0.0
    %69 = vmatpush1.msra.mxu0 0.0
    %70 = vmatprep.subr.mxu0 0.0
    %71 = vmatpush1.msra.mxu0 0.0
    %72 = vmatprep.subr.mxu0 0.0
    %73 = vmatpush1.msra.mxu0 0.0
    %74 = vmatprep.subr.mxu0 0.0
    %75 = vmatpush1.msra.mxu0 0.0
    %76 = vmatprep.subr.mxu0 0.0
    %77 = vmatpush1.msra.mxu0 0.0
    %78 = vmatprep.subr.mxu0 0.0
    %79 = vmatpush1.msra.mxu0 0.0
    %80 = vmatprep.subr.mxu0 0.0
    %81 = vmatpush1.msra.mxu0 0.0
    %82 = vmatprep.subr.mxu0 0.0
    %83 = vmatpush1.msra.mxu0 0.0
    %84 = vmatprep.subr.mxu0 0.0
    %85 = vmatpush1.msra.mxu0 0.0
    %86 = vmatprep.subr.mxu0 0.0
    %87 = vmatpush1.msra.mxu0 0.0
    %88 = vmatprep.subr.mxu0 0.0
    %89 = vmatpush1.msra.mxu0 0.0
    %90 = vmatprep.subr.mxu0 0.0
    %91 = vmatpush1.msra.mxu0 0.0
    %92 = vmatprep.subr.mxu0 0.0
    %93 = vmatpush1.msra.mxu0 0.0
    %94 = vmatprep.subr.mxu0 0.0
    %95 = vmatpush1.msra.mxu0 0.0
    %96 = vmatprep.mubr.f32.mxu0 0.0
    %97 = vmatmul.mubr.f32.gmra.mrb[0].mxu0 %v15
    %v98 = vpop.f32.mrb[0].mxu0
    %v99 = vadd.f32 0.0, %v98
    %v100 = vpop.f32.mrb[0].mxu0
    %101 = vdwg.mxu0
    %v102 = vld [vmem:[%s2] sm:$0x1]
    %v104 = vlaneseq
    %v105 = vshrl.u32 %v104, 7
    %v106 = vsub.s32 0, %v105
    %v107 = vrot.slane %v102, %v106
    %v109 = vsub.f32 %v99, %v107
    %vm110 = vcmask 25600
    %111 = vst.msk [vmem:[#allocation2] sm:$0x3] %vm110, %v109
    %v112 = vmax.f32 %v109, 0.0
    %v113 = vand.u32 2147483647, %v109
    %v114 = vsub.f32 0.0, %v113
    %v115 = vmul.f32 %v114, 1.442695
    %v116 = vpow.pop %v115
    %v117 = vadd.f32 %v116, 1.0
    %v118 = vlog2.pop %v117
    %v119 = vmul.f32 %v118, 0.6931472
    %v120 = vmul.f32 -0.5, %v116
    %v121 = vadd.f32 %v120, 1.0
    %v122 = vmul.f32 %v121, %v116
    %v123 = vand.u32 2147483647, %v116
    %vm124 = vcmp.lt.f32.partialorder %v123, 0.0004427343
    %v125 = vsel %vm124, %v122, %v119
    %v126 = vadd.f32 %v112, %v125
    %v127 = vadd.f32 %v126, 1e-06
    %vm128 = vcmask 58400
    %129 = vst.msk [vmem:[#allocation2] sm:$0x3] %vm128, %v127
    // Predicated region
    $region14: #{tpu_custom_call.1} parent=1 // pred_check
      _
    $region15: #{tpu_custom_call.1} parent=1 // pred_check_branch
      %131 = sbr.rel (0) target = $region17
    $region16: #{tpu_custom_call.1} parent=1 // pred_region
      %s133 = ssub.s32 32, 32
      %134 = vsyncadd [#allocation3], %s133
      %s136 = sshll.u32 [#allocation2], 4
      %s137 = int_to_ptr.vmem [resolvable:$true] %s136
      %139 = dma.vmem_to_hbm [thread:$0]  %s137, 32, %s3, [#allocation3]
    $region17: #{tpu_custom_call.1} parent=1 // pred_fallthru
      _
    // Predicated region
    $region18: #{tpu_custom_call.1} parent=1 // pred_check
      _
    $region19: #{tpu_custom_call.1} parent=1 // pred_check_branch
      %141 = sbr.rel (0) target = $region21
    $region20: #{tpu_custom_call.1} parent=1 // pred_region
      %142 = dma.done [#allocation3], 32
    $region21: #{tpu_custom_call.1} parent=1 // pred_fallthru
      _
    %143 = vsyncpa [#allocation3], 1

</llo_original>
